<compile_context>
chip_gen: v5e
topology: v5e:2x2
jax: 0.10.0
libtpu: 0.0.40
codegen_flags: <defaults>
</compile_context>

<pallas_src>
import functools
import math

import jax
import jax.numpy as jnp
from jax.experimental import pallas as pl
from jax.experimental.pallas import tpu as pltpu

LAYER_NORM_EPS = 1e-12
_VMEM_LIMIT = 48 * 1024 * 1024  # below v7x physical (64 MiB), above scoped defaults


# ---------------------------------------------------------------------------
# tile pickers (respect the (8, 128) block rules, keep MXU-sized tiles)
# ---------------------------------------------------------------------------
def _pick_row_tile(m, requested):
    """Largest divisor of m that is a multiple of 8 (or == m) and <= requested.
    If that leaves a single grid step, prefer a halved tile so v7x's two
    TensorCores both get work."""
    best = None
    for d in range(min(requested, m), 0, -1):
        if m % d == 0 and (d % 8 == 0 or d == m):
            best = d
            break
    if best is None:
        best = m
    if m // best < 2:  # try to expose >= 2 parallel steps (v7x megacore)
        for d in range(m // 2, 7, -1):
            if m % d == 0 and d % 8 == 0:
                best = d
                break
    return best


def _pick_k_tile(h, requested):
    """Reduction tile along the contracted dim: multiple of 128 or full H."""
    for d in range(min(requested, h), 127, -1):
        if h % d == 0 and d % 128 == 0:
            return d
    return h


def _pick_heads_per_block(num_heads, head_dim, requested):
    """Heads per attention grid step: hpb divides nH and hpb*dH is lane-dense
    (multiple of 128) unless we fall back to all heads (full extent)."""
    for d in range(min(requested, num_heads), 0, -1):
        if num_heads % d == 0 and (d * head_dim) % 128 == 0:
            return d
    return num_heads


# ---------------------------------------------------------------------------
# Kernel 1: fused Q/K/V projection, K-tiled matmul + bias
# ---------------------------------------------------------------------------
def _qkv_proj_kernel(x_ref, w_ref, b_ref, q_ref, k_ref, v_ref, acc_ref,
                     *, hidden, compute_dtype):
    k_step = pl.program_id(1)

    @pl.when(k_step == 0)
    def _():
        acc_ref[...] = jnp.zeros_like(acc_ref)

    x = x_ref[...]
    w = w_ref[...]
    if compute_dtype is not None:
        x = x.astype(compute_dtype)
        w = w.astype(compute_dtype)
    acc_ref[...] += jnp.dot(x, w, preferred_element_type=jnp.float32)

    @pl.when(k_step == pl.num_programs(1) - 1)
    def _():
        y = acc_ref[...] + b_ref[...].astype(jnp.float32)
        q_ref[...] = y[:, :hidden].astype(q_ref.dtype)
        k_ref[...] = y[:, hidden:2 * hidden].astype(k_ref.dtype)
        v_ref[...] = y[:, 2 * hidden:].astype(v_ref.dtype)


# ---------------------------------------------------------------------------
# Kernel 2: per (batch, head-group) scaled-dot-product attention
# ---------------------------------------------------------------------------
def _attention_kernel(*refs, scale, heads_per_block, head_dim,
                      has_mask, want_probs, compute_dtype):
    if has_mask:
        q_ref, k_ref, v_ref, mask_ref = refs[:4]
        out_refs = refs[4:]
    else:
        q_ref, k_ref, v_ref = refs[:3]
        mask_ref = None
        out_refs = refs[3:]
    ctx_ref = out_refs[0]
    probs_ref = out_refs[1] if want_probs else None

    # fold 1/sqrt(dH) into q: (S, hpb*dH) mul instead of an (S, S) mul per head
    q_all = q_ref[...].astype(jnp.float32) * jnp.float32(scale)
    k_all = k_ref[...]
    v_all = v_ref[...]
    if compute_dtype is not None:
        q_all = q_all.astype(compute_dtype)
        k_all = k_all.astype(compute_dtype)
        v_all = v_all.astype(compute_dtype)

    mask = mask_ref[0].astype(jnp.float32) if has_mask else None  # (1, S)

    ctx_cols = []
    for hh in range(heads_per_block):
        lo, hi = hh * head_dim, (hh + 1) * head_dim
        qh = q_all[:, lo:hi]
        kh = k_all[:, lo:hi]
        vh = v_all[:, lo:hi]

        scores = jnp.dot(qh, kh.T, preferred_element_type=jnp.float32)  # (S, S)
        if has_mask:
            scores = scores + mask  # broadcast over query rows

        # numerically-stable softmax; reciprocal-multiply instead of (S,S) divide
        m = jnp.max(scores, axis=-1, keepdims=True)
        e = jnp.exp(scores - m)
        inv = pl.reciprocal(jnp.sum(e, axis=-1, keepdims=True), approx=False)
        p = e * inv

        if want_probs:
            probs_ref[0, hh] = p.astype(probs_ref.dtype)

        # attention-probs dropout / head_mask are inference no-ops
        pv = p.astype(compute_dtype) if compute_dtype is not None else p
        ctx_cols.append(jnp.dot(pv, vh, preferred_element_type=jnp.float32))

    ctx = ctx_cols[0] if len(ctx_cols) == 1 else jnp.concatenate(ctx_cols, axis=-1)
    ctx_ref[...] = ctx.astype(ctx_ref.dtype)  # lane-dense (S, hpb*dH) store


# ---------------------------------------------------------------------------
# Kernel 3: output dense (K-tiled) + residual add + LayerNorm (BertSelfOutput)
# ---------------------------------------------------------------------------
def _output_kernel(ctx_ref, res_ref, w_ref, b_ref, g_ref, beta_ref, o_ref,
                   acc_ref, *, compute_dtype):
    k_step = pl.program_id(1)

    @pl.when(k_step == 0)
    def _():
        acc_ref[...] = jnp.zeros_like(acc_ref)

    x = ctx_ref[...]
    w = w_ref[...]
    if compute_dtype is not None:
        x = x.astype(compute_dtype)
        w = w.astype(compute_dtype)
    acc_ref[...] += jnp.dot(x, w, preferred_element_type=jnp.float32)

    @pl.when(k_step == pl.num_programs(1) - 1)
    def _():
        h = acc_ref[...] + b_ref[...].astype(jnp.float32)
        # hidden dropout is identity at inference time
        h = h + res_ref[...].astype(jnp.float32)
        mean = jnp.mean(h, axis=-1, keepdims=True)
        c = h - mean
        var = jnp.mean(c * c, axis=-1, keepdims=True)
        y = c * jax.lax.rsqrt(var + jnp.float32(LAYER_NORM_EPS))
        y = y * g_ref[...].astype(jnp.float32) + beta_ref[...].astype(jnp.float32)
        o_ref[...] = y.astype(o_ref.dtype)


# ---------------------------------------------------------------------------
# Wrapper
# ---------------------------------------------------------------------------
def bert_attention(hidden_states, params, attention_mask=None, *,
                   num_heads, output_attentions=True,
                   tile_m=256, tile_k=512, heads_per_block=8,
                   matmul_dtype=None):
    """BertAttention forward.

    hidden_states : [B, S, H]
    params        : (wq_t, bq, wk_t, bk, wv_t, bv, wo_t, bo, ln_gamma, ln_beta)
                    linear weights pre-transposed, i.e. y = x @ w_t + b.
    attention_mask: [B, S] (or [B,1,1,S]) additive key mask, or None.
    matmul_dtype  : e.g. jnp.bfloat16 to feed the MXU bf16 (f32 accumulation).
    """
    (wq_t, bq, wk_t, bk, wv_t, bv, wo_t, bo, ln_gamma, ln_beta) = params
    B, S, H = hidden_states.shape
    nH = num_heads
    dH = H // nH
    M = B * S
    dtype = hidden_states.dtype

    tm = _pick_row_tile(M, tile_m)
    tk = _pick_k_tile(H, tile_k)
    hpb = _pick_heads_per_block(nH, dH, heads_per_block)

    x2d = hidden_states.reshape(M, H)

    # one-time param fusion: (H, 3H) weight, (1, 3H) bias
    w_qkv = jnp.concatenate([wq_t, wk_t, wv_t], axis=1)
    b_qkv = jnp.concatenate([bq, bk, bv]).reshape(1, 3 * H)

    grid_mk = (M // tm, H // tk)
    x_spec = pl.BlockSpec((tm, tk), lambda i, k: (i, k))
    row_spec = pl.BlockSpec((tm, H), lambda i, k: (i, 0))
    wqkv_spec = pl.BlockSpec((tk, 3 * H), lambda i, k: (k, 0))
    bqkv_spec = pl.BlockSpec((1, 3 * H), lambda i, k: (0, 0))

    mm_params = pltpu.CompilerParams(
        dimension_semantics=("parallel", "arbitrary"),
        vmem_limit_bytes=_VMEM_LIMIT)

    # ---- fused Q/K/V projection --------------------------------------------
    qkv_cost = pl.CostEstimate(
        flops=2 * M * H * 3 * H, transcendentals=0,
        bytes_accessed=4 * (4 * M * H + 3 * H * H + 3 * H))
    q2d, k2d, v2d = pl.pallas_call(
        functools.partial(_qkv_proj_kernel, hidden=H, compute_dtype=matmul_dtype),
        out_shape=(jax.ShapeDtypeStruct((M, H), dtype),) * 3,
        grid_spec=pltpu.PrefetchScalarGridSpec(
            num_scalar_prefetch=0, grid=grid_mk,
            in_specs=[x_spec, wqkv_spec, bqkv_spec],
            out_specs=[row_spec, row_spec, row_spec],
            scratch_shapes=[pltpu.VMEM((tm, 3 * H), jnp.float32)]),
        compiler_params=mm_params,
        cost_estimate=qkv_cost,
    )(x2d, w_qkv, b_qkv)

    # ---- attention (no XLA head transposes: blocked views of (M, H)) --------
    has_mask = attention_mask is not None
    grid_attn = (B, nH // hpb)
    head_spec = pl.BlockSpec((S, hpb * dH), lambda b, h: (b, h))

    in_specs = [head_spec, head_spec, head_spec]
    operands = [q2d, k2d, v2d]
    if has_mask:
        mask3 = attention_mask.reshape(B, 1, S).astype(jnp.float32)
        in_specs.append(pl.BlockSpec((1, 1, S), lambda b, h: (b, 0, 0)))
        operands.append(mask3)

    out_shapes = [jax.ShapeDtypeStruct((M, H), dtype)]   # ctx, already "merged"
    out_specs = [head_spec]
    if output_attentions:
        out_shapes.append(jax.ShapeDtypeStruct((B, nH, S, S), dtype))
        out_specs.append(pl.BlockSpec((1, hpb, S, S), lambda b, h: (b, h, 0, 0)))

    attn_cost = pl.CostEstimate(
        flops=4 * B * nH * S * S * dH,
        transcendentals=B * nH * S * S,
        bytes_accessed=4 * (4 * M * H
                            + (B * nH * S * S if output_attentions else 0)
                            + (B * S if has_mask else 0)))
    attn_out = pl.pallas_call(
        functools.partial(_attention_kernel, scale=1.0 / math.sqrt(dH),
                          heads_per_block=hpb, head_dim=dH,
                          has_mask=has_mask, want_probs=output_attentions,
                          compute_dtype=matmul_dtype),
        out_shape=tuple(out_shapes),
        grid_spec=pltpu.PrefetchScalarGridSpec(
            num_scalar_prefetch=0, grid=grid_attn,
            in_specs=in_specs, out_specs=out_specs),
        compiler_params=pltpu.CompilerParams(
            dimension_semantics=("parallel", "parallel"),
            vmem_limit_bytes=_VMEM_LIMIT),
        cost_estimate=attn_cost,
    )(*operands)

    if output_attentions:
        ctx2d, probs = attn_out
    else:
        ctx2d = attn_out[0] if isinstance(attn_out, (tuple, list)) else attn_out
        probs = None

    # ---- output dense + residual + LayerNorm --------------------------------
    ctx_spec = pl.BlockSpec((tm, tk), lambda i, k: (i, k))
    w_o_spec = pl.BlockSpec((tk, H), lambda i, k: (k, 0))
    vec_spec = pl.BlockSpec((1, H), lambda i, k: (0, 0))
    out_cost = pl.CostEstimate(
        flops=2 * M * H * H, transcendentals=M,
        bytes_accessed=4 * (3 * M * H + H * H + 3 * H))
    out2d = pl.pallas_call(
        functools.partial(_output_kernel, compute_dtype=matmul_dtype),
        out_shape=jax.ShapeDtypeStruct((M, H), dtype),
        grid_spec=pltpu.PrefetchScalarGridSpec(
            num_scalar_prefetch=0, grid=grid_mk,
            in_specs=[ctx_spec, row_spec, w_o_spec, vec_spec, vec_spec, vec_spec],
            out_specs=row_spec,
            scratch_shapes=[pltpu.VMEM((tm, H), jnp.float32)]),
        compiler_params=mm_params,
        cost_estimate=out_cost,
    )(ctx2d, x2d, wo_t, bo.reshape(1, H),
      ln_gamma.reshape(1, H), ln_beta.reshape(1, H))

    attention_output = out2d.reshape(B, S, H)
    if output_attentions:
        return (attention_output, probs)
    return (attention_output,)


# ---------------------------------------------------------------------------
# Pure-JAX reference (matches the PyTorch module at inference time)
# ---------------------------------------------------------------------------
def reference_bert_attention(x, params, attention_mask, num_heads):
    (wq_t, bq, wk_t, bk, wv_t, bv, wo_t, bo, gamma, beta) = params
    B, S, H = x.shape
    nH = num_heads
    dH = H // nH

    q = jnp.einsum("bsh,hk->bsk", x, wq_t) + bq
    k = jnp.einsum("bsh,hk->bsk", x, wk_t) + bk
    v = jnp.einsum("bsh,hk->bsk", x, wv_t) + bv

    def split(t):
        return t.reshape(B, S, nH, dH).transpose(0, 2, 1, 3)

    q, k, v = split(q), split(k), split(v)
    scores = jnp.einsum("bhqd,bhkd->bhqk", q, k) / math.sqrt(dH)
    if attention_mask is not None:
        scores = scores + attention_mask.reshape(B, 1, 1, S)
    probs = jax.nn.softmax(scores, axis=-1)
    ctx = jnp.einsum("bhqk,bhkd->bhqd", probs, v)
    ctx = ctx.transpose(0, 2, 1, 3).reshape(B, S, H)

    h = jnp.einsum("bsh,hk->bsk", ctx, wo_t) + bo
    h = h + x
    mean = jnp.mean(h, axis=-1, keepdims=True)
    var = jnp.mean((h - mean) ** 2, axis=-1, keepdims=True)
    h = (h - mean) * jax.lax.rsqrt(var + LAYER_NORM_EPS)
    return h * gamma + beta, probs


if __name__ == "__main__":
    # Small BERT-like config: batch=2, seq=8, hidden=32, heads=4 (head_dim=8)
    B, S, H, NH = 2, 8, 32, 4

    key = jax.random.PRNGKey(0)
    ks = jax.random.split(key, 11)

    x = jax.random.normal(ks[0], (B, S, H), dtype=jnp.float32)

    def linear_params(kw, kb):
        # nn.Linear(H, H): weight [H_out, H_in]; kernel consumes its transpose.
        w = jax.random.normal(kw, (H, H), dtype=jnp.float32) / math.sqrt(H)
        b = 0.02 * jax.random.normal(kb, (H,), dtype=jnp.float32)
        return w.T, b

    wq_t, bq = linear_params(ks[1], ks[2])
    wk_t, bk = linear_params(ks[3], ks[4])
    wv_t, bv = linear_params(ks[5], ks[6])
    wo_t, bo = linear_params(ks[7], ks[8])
    ln_gamma = 1.0 + 0.1 * jax.random.normal(ks[9], (H,), dtype=jnp.float32)
    ln_beta = 0.1 * jax.random.normal(ks[10], (H,), dtype=jnp.float32)

    params = (wq_t, bq, wk_t, bk, wv_t, bv, wo_t, bo, ln_gamma, ln_beta)

    # HF-style additive key mask: 0 = attend, -10000 = masked (pad last 2 keys
    # of the second batch element).
    attn_mask = jnp.zeros((B, S), dtype=jnp.float32)
    attn_mask = attn_mask.at[1, 6:].set(-10000.0)

    # 1) f32 path, with mask, probs requested — exact check vs reference.
    y, probs = bert_attention(x, params, attn_mask, num_heads=NH,
                              output_attentions=True)
    y = jax.block_until_ready(y)
    y_ref, probs_ref = reference_bert_attention(x, params, attn_mask, NH)
    assert y.shape == (B, S, H)
    assert probs.shape == (B, NH, S, S)
    assert jnp.allclose(y, y_ref, atol=1e-4, rtol=1e-4), "context mismatch"
    assert jnp.allclose(probs, probs_ref, atol=1e-4, rtol=1e-4), "probs mismatch"

    # 2) no mask + no probs output (exercises the mask-skip / no-probs variant).
    (y_nm,) = bert_attention(x, params, None, num_heads=NH,
                             output_attentions=False)
    y_nm = jax.block_until_ready(y_nm)
    y_nm_ref, _ = reference_bert_attention(x, params, None, NH)
    assert jnp.allclose(y_nm, y_nm_ref, atol=1e-4, rtol=1e-4), "no-mask mismatch"

    # 3) bf16 MXU path (production setting) — loose sanity check.
    y_bf, _ = bert_attention(x, params, attn_mask, num_heads=NH,
                             output_attentions=True,
                             matmul_dtype=jnp.bfloat16)
    y_bf = jax.block_until_ready(y_bf)
    assert jnp.allclose(y_bf, y_ref, atol=2e-1, rtol=2e-1), "bf16 path mismatch"

    print("KERNEL_OK")
</pallas_src>

<mosaic_0001>
module attributes {stable_mosaic.version = 11 : i64} {
  func.func @_qkv_proj_kernel(%arg0: i32, %arg1: i32, %arg2: memref<8x32xf32, #tpu.memory_space<vmem>>, %arg3: memref<32x96xf32, #tpu.memory_space<vmem>>, %arg4: memref<1x96xf32, #tpu.memory_space<vmem>>, %arg5: memref<8x32xf32, #tpu.memory_space<vmem>>, %arg6: memref<8x32xf32, #tpu.memory_space<vmem>>, %arg7: memref<8x32xf32, #tpu.memory_space<vmem>>, %arg8: memref<8x96xf32, #tpu.memory_space<vmem>>) attributes {dimension_semantics = [#tpu.dimension_semantics<parallel>, #tpu.dimension_semantics<arbitrary>], iteration_bounds = array<i64: 2, 1>, scalar_prefetch = 0 : i64, scratch_operands = 1 : i64, tpu.core_type = #tpu.core_type<tc>, window_params = [{transform_indices = @transform_0, window_bounds = array<i64: 8, 32>}, {transform_indices = @transform_1, window_bounds = array<i64: 32, 96>}, {pipeline_mode = #tpu.pipeline_mode<synchronous>, transform_indices = @transform_2, window_bounds = array<i64: 1, 96>}, {transform_indices = @transform_3, window_bounds = array<i64: 8, 32>}, {transform_indices = @transform_4, window_bounds = array<i64: 8, 32>}, {transform_indices = @transform_5, window_bounds = array<i64: 8, 32>}]} {
    %c0_i32 = arith.constant 0 : i32
    %0 = arith.cmpi eq, %arg1, %c0_i32 : i32
    %1 = arith.extui %0 : i1 to i32
    %c0_i32_0 = arith.constant 0 : i32
    %2 = arith.cmpi ne, %1, %c0_i32_0 : i32
    scf.if %2 {
      %cst_10 = arith.constant 0.000000e+00 : f32
      %12 = vector.broadcast %cst_10 : f32 to vector<8x96xf32>
      %c0_11 = arith.constant 0 : index
      %c0_12 = arith.constant 0 : index
      %13 = vector.load %arg8[%c0_11, %c0_12] : memref<8x96xf32, #tpu.memory_space<vmem>>, vector<8x96xf32>
      tpu.vector_store %arg8[%c0_11, %c0_12], %12 {strides = array<i32>} : memref<8x96xf32, #tpu.memory_space<vmem>>, vector<8x96xf32>,
    } else {
    }
    %c0 = arith.constant 0 : index
    %c0_1 = arith.constant 0 : index
    %3 = vector.load %arg2[%c0, %c0_1] : memref<8x32xf32, #tpu.memory_space<vmem>>, vector<8x32xf32>
    %c0_2 = arith.constant 0 : index
    %c0_3 = arith.constant 0 : index
    %4 = vector.load %arg3[%c0_2, %c0_3] : memref<32x96xf32, #tpu.memory_space<vmem>>, vector<32x96xf32>
    %c0_4 = arith.constant 0 : index
    %c0_5 = arith.constant 0 : index
    %5 = vector.load %arg8[%c0_4, %c0_5] : memref<8x96xf32, #tpu.memory_space<vmem>>, vector<8x96xf32>
    %cst = arith.constant dense<0.000000e+00> : vector<8x96xf32>
    %6 = tpu.matmul %3, %4, %cst {dimension_numbers = #tpu.dot_dimension_numbers<[1], [0], [0], [1], [0, 0, 1, 1], [], []>} : vector<8x32xf32>, vector<32x96xf32>, vector<8x96xf32> -> vector<8x96xf32>
    %7 = arith.addf %5, %6 : vector<8x96xf32>
    %c0_6 = arith.constant 0 : index
    %c0_7 = arith.constant 0 : index
    %8 = vector.load %arg8[%c0_6, %c0_7] : memref<8x96xf32, #tpu.memory_space<vmem>>, vector<8x96xf32>
    tpu.vector_store %arg8[%c0_6, %c0_7], %7 {strides = array<i32>} : memref<8x96xf32, #tpu.memory_space<vmem>>, vector<8x96xf32>,
    %c0_i32_8 = arith.constant 0 : i32
    %9 = arith.cmpi eq, %arg1, %c0_i32_8 : i32
    %10 = arith.extui %9 : i1 to i32
    %c0_i32_9 = arith.constant 0 : i32
    %11 = arith.cmpi ne, %10, %c0_i32_9 : i32
    scf.if %11 {
      %c0_10 = arith.constant 0 : index
      %c0_11 = arith.constant 0 : index
      %12 = vector.load %arg8[%c0_10, %c0_11] : memref<8x96xf32, #tpu.memory_space<vmem>>, vector<8x96xf32>
      %c0_12 = arith.constant 0 : index
      %c0_13 = arith.constant 0 : index
      %13 = vector.load %arg4[%c0_12, %c0_13] : memref<1x96xf32, #tpu.memory_space<vmem>>, vector<1x96xf32>
      %14 = vector.broadcast %13 : vector<1x96xf32> to vector<8x96xf32>
      %15 = arith.addf %12, %14 : vector<8x96xf32>
      %16 = vector.extract_strided_slice %15 {offsets = [0, 0], sizes = [8, 32], strides = [1, 1]} : vector<8x96xf32> to vector<8x32xf32>
      %c0_14 = arith.constant 0 : index
      %c0_15 = arith.constant 0 : index
      %17 = vector.load %arg5[%c0_14, %c0_15] : memref<8x32xf32, #tpu.memory_space<vmem>>, vector<8x32xf32>
      tpu.vector_store %arg5[%c0_14, %c0_15], %16 {strides = array<i32>} : memref<8x32xf32, #tpu.memory_space<vmem>>, vector<8x32xf32>,
      %18 = vector.extract_strided_slice %15 {offsets = [0, 32], sizes = [8, 32], strides = [1, 1]} : vector<8x96xf32> to vector<8x32xf32>
      %c0_16 = arith.constant 0 : index
      %c0_17 = arith.constant 0 : index
      %19 = vector.load %arg6[%c0_16, %c0_17] : memref<8x32xf32, #tpu.memory_space<vmem>>, vector<8x32xf32>
      tpu.vector_store %arg6[%c0_16, %c0_17], %18 {strides = array<i32>} : memref<8x32xf32, #tpu.memory_space<vmem>>, vector<8x32xf32>,
      %20 = vector.extract_strided_slice %15 {offsets = [0, 64], sizes = [8, 32], strides = [1, 1]} : vector<8x96xf32> to vector<8x32xf32>
      %c0_18 = arith.constant 0 : index
      %c0_19 = arith.constant 0 : index
      %21 = vector.load %arg7[%c0_18, %c0_19] : memref<8x32xf32, #tpu.memory_space<vmem>>, vector<8x32xf32>
      tpu.vector_store %arg7[%c0_18, %c0_19], %20 {strides = array<i32>} : memref<8x32xf32, #tpu.memory_space<vmem>>, vector<8x32xf32>,
    } else {
    }
    return
  }
  func.func @transform_0(%arg0: i32, %arg1: i32) -> (i32, i32) {
    %c0_i32 = arith.constant 0 : i32
    return %arg0, %arg1 : i32, i32
  }
  func.func @transform_1(%arg0: i32, %arg1: i32) -> (i32, i32) {
    %c0_i32 = arith.constant 0 : i32
    %c0_i32_0 = arith.constant 0 : i32
    return %arg1, %c0_i32 : i32, i32
  }
  func.func @transform_2(%arg0: i32, %arg1: i32) -> (i32, i32) {
    %c0_i32 = arith.constant 0 : i32
    %c0_i32_0 = arith.constant 0 : i32
    %c0_i32_1 = arith.constant 0 : i32
    return %c0_i32, %c0_i32_0 : i32, i32
  }
  func.func @transform_3(%arg0: i32, %arg1: i32) -> (i32, i32) {
    %c0_i32 = arith.constant 0 : i32
    %c0_i32_0 = arith.constant 0 : i32
    return %arg0, %c0_i32 : i32, i32
  }
  func.func @transform_4(%arg0: i32, %arg1: i32) -> (i32, i32) {
    %c0_i32 = arith.constant 0 : i32
    %c0_i32_0 = arith.constant 0 : i32
    return %arg0, %c0_i32 : i32, i32
  }
  func.func @transform_5(%arg0: i32, %arg1: i32) -> (i32, i32) {
    %c0_i32 = arith.constant 0 : i32
    %c0_i32_0 = arith.constant 0 : i32
    return %arg0, %c0_i32 : i32, i32
  }
}

</mosaic_0001>

<llo_original>
// kernel: tpu_custom_call.1
$region0: #{tpu_custom_call.1}
  #allocation0 [shape = 'u32[]', space=smem, size = 0x4, offset = 0x4, fixed_abs, tag = 'smem constant byte address 0x4 - core index']
  #allocation1 [shape = 'u32[72,128]{1,0:T(1,128)}', space=vmem, size = 0x9000, scoped, tag = 'internal scratch']
  #allocation2 [shape = 'f32[8,96]{1,0:T(8,128)}', space=vmem, size = 0x1000, scoped, tag = 'scratch operand']
  %s0 = inlined_call_operand.hbm [shape: f32[16,32], index: 0, kind: input, shape index: {}]
  %s1 = inlined_call_operand.hbm [shape: f32[32,96], index: 1, kind: input, shape index: {}]
  %s2 = inlined_call_operand.vmem [shape: f32[1,96], index: 2, kind: input, shape index: {}]
  %s3 = inlined_call_operand.hbm [shape: f32[16,32], index: 3, kind: output, shape index: {0}]
  %s4 = inlined_call_operand.hbm [shape: f32[16,32], index: 4, kind: output, shape index: {1}]
  %s5 = inlined_call_operand.hbm [shape: f32[16,32], index: 5, kind: output, shape index: {2}]
  %6 = xla_tuple %s3, %s4, %s5
  %s7 = sld [smem:[#allocation0]]
  $region77: #{tpu_custom_call.1} parent=0
    _
  %s9 = ssub.s32 1, %s7
  %s10 = scalar_select 0, %s9, %s7
  $region1: #{tpu_custom_call.1} parent=0
    #allocation3 [shape = 'u8[8192]{0}', space=vmem, size = 0x2000, scoped, tag = 'input window, operand 0']
    #allocation4 [shape = 's32[2]{0}', space=sflag, size = 0x8, scoped, tag = 'scoped memory for tpu_custom_call.1']
    #allocation5 [shape = 's32[2]{0}', space=sflag, size = 0x8, scoped, tag = 'scoped memory for tpu_custom_call.1']
    #allocation6 [shape = 'u8[16384]{0}', space=vmem, size = 0x4000, scoped, tag = 'input window, operand 1, single buffered']
    #allocation7 [shape = 's32[1]{0}', space=sflag, size = 0x4, scoped, tag = 'scoped memory for tpu_custom_call.1']
    #allocation8 [shape = 'u8[8192]{0}', space=vmem, size = 0x2000, scoped, tag = 'output window, operand 0']
    #allocation9 [shape = 'u8[8192]{0}', space=vmem, size = 0x2000, scoped, tag = 'output window, operand 1']
    #allocation10 [shape = 's32[2]{0}', space=sflag, size = 0x8, scoped, tag = 'scoped memory for tpu_custom_call.1']
    #allocation11 [shape = 'u8[8192]{0}', space=vmem, size = 0x2000, scoped, tag = 'output window, operand 2']
    %11 = vsyncpa [#allocation4], 0
    %s12 = scalar_lea.sflag [#allocation4], 1
    %13 = vsyncpa %s12, 0
    %14 = vsyncpa [#allocation7], 0
    %15 = vsyncpa [#allocation5], 0
    %s16 = scalar_lea.sflag [#allocation5], 1
    %17 = vsyncpa %s16, 0
    %18 = vsyncpa [#allocation10], 0
    %s19 = scalar_lea.sflag [#allocation10], 1
    %20 = vsyncpa %s19, 0
    loop: start=0, step=1, limit=4
    $region2: #{tpu_custom_call.1} parent=1 // loop_pre_header
      _
    $region3: #{tpu_custom_call.1} parent=1 // loop_header
      %s22 = sphi 0, %s26
      %p23 = scmp.ge.s32.totalorder %s22, 4
      %s29 = sphi 0, %s41
      %s30 = sphi 0, %s37
      %s31 = sphi 0, %s29
      %s32 = sphi 0, %s30
      %s33 = sphi 0, %s31
      %s34 = sphi 0, %s32
      %s46 = sphi 0, %s48
      %s49 = sphi 0, %s46
      %s50 = sphi 0, %s49
      %s66 = sphi 0, %s50
      %s72 = sphi 0, %s74
      %s75 = sphi 0, %s72
      %s76 = sphi 0, %s75
      %s92 = sphi 0, %s76
      %s96 = sphi 0, %s96
      %s98 = sphi 0, %s96
      %s99 = sphi 0, %s98
      %s113 = sphi 0, %s99
      %s119 = sphi 0, %s121
      %s122 = sphi 0, %s119
      %s123 = sphi 0, %s122
      %s139 = sphi 0, %s123
      %s145 = sphi 0, %s147
      %s148 = sphi 0, %s145
      %s149 = sphi 0, %s148
      %s165 = sphi 0, %s149
      %s171 = sphi 0, %s173
      %s174 = sphi 0, %s171
      %s175 = sphi 0, %s174
      %s191 = sphi 0, %s175
    $region4: #{tpu_custom_call.1} parent=1 // loop_header_branch
      %25 = sbr.rel (%p23) target = $region8
    $region5: #{tpu_custom_call.1} parent=1 // loop_body
      %s27 = ssub.s32 %s22, 1
      %s28 = ssub.s32 %s22, 2
      %s35 = sadd.s32 1, %s30
      %p36 = scmp.ge.s32.totalorder %s35, 1
      %s37 = scalar_select %p36, 0, %s35
      %s38 = sadd.s32 1, %s29
      %s39 = scalar_select %p36, %s38, %s29
      %p40 = scmp.ge.s32.totalorder %s39, 2
      %s41 = scalar_select %p40, 0, %s39
      %s42 = ssub.s32 %s29, %s41
      %s43 = ssub.s32 %s30, %s37
      %s44 = sor.u32 %s42, %s43
      %p45 = scmp.eq.s32.totalorder %s44, 0
      %s47 = sadd.s32 %s46, 1
      %s48 = scalar_select %p45, %s46, %s47
      %p51 = pneg %p45
      %p52 = scmp.eq.s32.totalorder %s22, 1
      %p53 = por %p51, %p52
      %p54 = scmp.ne.s32.totalorder %s46, %s49
      %p55 = scmp.eq.s32.totalorder %s22, 0
      %p56 = por %p54, %p55
      %p57 = scmp.ne.s32.totalorder %s46, %s49
      %p58 = scmp.eq.s32.totalorder %s27, 1
      %p59 = por %p57, %p58
      %p60 = scmp.ne.s32.totalorder %s49, %s50
      %p61 = scmp.eq.s32.totalorder %s27, 0
      %p62 = por %p60, %p61
      %p63 = scmp.ne.s32.totalorder %s49, %s50
      %p64 = scmp.eq.s32.totalorder %s28, 1
      %p65 = por %p63, %p64
      %p67 = scmp.ne.s32.totalorder %s50, %s66
      %p68 = scmp.eq.s32.totalorder %s28, 0
      %p69 = por %p67, %p68
      %s70 = ssub.s32 %s30, %s37
      %p71 = scmp.eq.s32.totalorder %s70, 0
      %s73 = sadd.s32 %s72, 1
      %s74 = scalar_select %p71, %s72, %s73
      %p77 = pneg %p71
      %p78 = scmp.eq.s32.totalorder %s22, 1
      %p79 = por %p77, %p78
      %p80 = scmp.ne.s32.totalorder %s72, %s75
      %p81 = scmp.eq.s32.totalorder %s22, 0
      %p82 = por %p80, %p81
      %p83 = scmp.ne.s32.totalorder %s72, %s75
      %p84 = scmp.eq.s32.totalorder %s27, 1
      %p85 = por %p83, %p84
      %p86 = scmp.ne.s32.totalorder %s75, %s76
      %p87 = scmp.eq.s32.totalorder %s27, 0
      %p88 = por %p86, %p87
      %p89 = scmp.ne.s32.totalorder %s75, %s76
      %p90 = scmp.eq.s32.totalorder %s28, 1
      %p91 = por %p89, %p90
      %p93 = scmp.ne.s32.totalorder %s76, %s92
      %p94 = scmp.eq.s32.totalorder %s28, 0
      %p95 = por %p93, %p94
      %s97 = sadd.s32 %s96, 1
      %p100 = scmp.eq.s32.totalorder %s22, 1
      %p101 = scmp.ne.s32.totalorder %s96, %s98
      %p102 = scmp.eq.s32.totalorder %s22, 0
      %p103 = por %p101, %p102
      %p104 = scmp.ne.s32.totalorder %s96, %s98
      %p105 = scmp.eq.s32.totalorder %s27, 1
      %p106 = por %p104, %p105
      %p107 = scmp.ne.s32.totalorder %s98, %s99
      %p108 = scmp.eq.s32.totalorder %s27, 0
      %p109 = por %p107, %p108
      %p110 = scmp.ne.s32.totalorder %s98, %s99
      %p111 = scmp.eq.s32.totalorder %s28, 1
      %p112 = por %p110, %p111
      %p114 = scmp.ne.s32.totalorder %s99, %s113
      %p115 = scmp.eq.s32.totalorder %s28, 0
      %p116 = por %p114, %p115
      %s117 = ssub.s32 %s29, %s41
      %p118 = scmp.eq.s32.totalorder %s117, 0
      %s120 = sadd.s32 %s119, 1
      %s121 = scalar_select %p118, %s119, %s120
      %p124 = pneg %p118
      %p125 = scmp.eq.s32.totalorder %s22, 1
      %p126 = por %p124, %p125
      %p127 = scmp.ne.s32.totalorder %s119, %s122
      %p128 = scmp.eq.s32.totalorder %s22, 0
      %p129 = por %p127, %p128
      %p130 = scmp.ne.s32.totalorder %s119, %s122
      %p131 = scmp.eq.s32.totalorder %s27, 1
      %p132 = por %p130, %p131
      %p133 = scmp.ne.s32.totalorder %s122, %s123
      %p134 = scmp.eq.s32.totalorder %s27, 0
      %p135 = por %p133, %p134
      %p136 = scmp.ne.s32.totalorder %s122, %s123
      %p137 = scmp.eq.s32.totalorder %s28, 1
      %p138 = por %p136, %p137
      %p140 = scmp.ne.s32.totalorder %s123, %s139
      %p141 = scmp.eq.s32.totalorder %s28, 0
      %p142 = por %p140, %p141
      %s143 = ssub.s32 %s29, %s41
      %p144 = scmp.eq.s32.totalorder %s143, 0
      %s146 = sadd.s32 %s145, 1
      %s147 = scalar_select %p144, %s145, %s146
      %p150 = pneg %p144
      %p151 = scmp.eq.s32.totalorder %s22, 1
      %p152 = por %p150, %p151
      %p153 = scmp.ne.s32.totalorder %s145, %s148
      %p154 = scmp.eq.s32.totalorder %s22, 0
      %p155 = por %p153, %p154
      %p156 = scmp.ne.s32.totalorder %s145, %s148
      %p157 = scmp.eq.s32.totalorder %s27, 1
      %p158 = por %p156, %p157
      %p159 = scmp.ne.s32.totalorder %s148, %s149
      %p160 = scmp.eq.s32.totalorder %s27, 0
      %p161 = por %p159, %p160
      %p162 = scmp.ne.s32.totalorder %s148, %s149
      %p163 = scmp.eq.s32.totalorder %s28, 1
      %p164 = por %p162, %p163
      %p166 = scmp.ne.s32.totalorder %s149, %s165
      %p167 = scmp.eq.s32.totalorder %s28, 0
      %p168 = por %p166, %p167
      %s169 = ssub.s32 %s29, %s41
      %p170 = scmp.eq.s32.totalorder %s169, 0
      %s172 = sadd.s32 %s171, 1
      %s173 = scalar_select %p170, %s171, %s172
      %p176 = pneg %p170
      %p177 = scmp.eq.s32.totalorder %s22, 1
      %p178 = por %p176, %p177
      %p179 = scmp.ne.s32.totalorder %s171, %s174
      %p180 = scmp.eq.s32.totalorder %s22, 0
      %p181 = por %p179, %p180
      %p182 = scmp.ne.s32.totalorder %s171, %s174
      %p183 = scmp.eq.s32.totalorder %s27, 1
      %p184 = por %p182, %p183
      %p185 = scmp.ne.s32.totalorder %s174, %s175
      %p186 = scmp.eq.s32.totalorder %s27, 0
      %p187 = por %p185, %p186
      %p188 = scmp.ne.s32.totalorder %s174, %s175
      %p189 = scmp.eq.s32.totalorder %s28, 1
      %p190 = por %p188, %p189
      %p192 = scmp.ne.s32.totalorder %s175, %s191
      %p193 = scmp.eq.s32.totalorder %s28, 0
      %p194 = por %p192, %p193
      %p195 = scmp.le.s32.totalorder 1, %s22
      %p196 = scmp.lt.s32.totalorder %s22, 3
      %p197 = pnand %p195, %p196
      %p198 = pneg %p197
      // Predicated region
      $region9: #{tpu_custom_call.1} parent=5 // pred_check
        _
      $region10: #{tpu_custom_call.1} parent=5 // pred_check_branch
        %200 = sbr.rel (%p197) target = $region12
      $region11: #{tpu_custom_call.1} parent=5 // pred_region
        %s201 = ssub.s32 %s22, 1
        // Predicated region
        $region13: #{tpu_custom_call.1} parent=11 // pred_check
          %p202 = pneg %p88
        $region14: #{tpu_custom_call.1} parent=11 // pred_check_branch
          %204 = sbr.rel (%p202) target = $region16
        $region15: #{tpu_custom_call.1} parent=11 // pred_region
          %s205 = smul.u32 4, %s32
          %207 = vsyncadd [#allocation7], 0
          %s208 = smul.addr %s205, 8
          %s209 = scalar_lea.hbm %s1, %s208
          %s210 = sshll.u32 %s209, 4
          %s211 = int_to_ptr.hbm [resolvable:$true] %s210
          %s212 = sshll.u32 [#allocation6], 4
          %s213 = int_to_ptr.vmem [resolvable:$true] %s212
          %218 = dma.hbm_to_vmem [thread:$0]  %s211, 512, %s213, [#allocation7], 128, 128, 8
        $region16: #{tpu_custom_call.1} parent=11 // pred_fallthru
          _
        // Predicated region
        $region17: #{tpu_custom_call.1} parent=11 // pred_check
          %p219 = pneg %p109
        $region18: #{tpu_custom_call.1} parent=11 // pred_check_branch
          %221 = sbr.rel (%p219) target = $region20
        $region19: #{tpu_custom_call.1} parent=11 // pred_region
          _
        $region20: #{tpu_custom_call.1} parent=11 // pred_fallthru
          _
      $region12: #{tpu_custom_call.1} parent=5 // pred_fallthru
        _
      %p222 = scmp.lt.s32.totalorder %s22, 2
      // Predicated region
      $region21: #{tpu_custom_call.1} parent=5 // pred_check
        %p223 = pneg %p222
      $region22: #{tpu_custom_call.1} parent=5 // pred_check_branch
        %225 = sbr.rel (%p223) target = $region24
      $region23: #{tpu_custom_call.1} parent=5 // pred_region
        // Predicated region
        $region25: #{tpu_custom_call.1} parent=23 // pred_check
          %p226 = pneg %p56
        $region26: #{tpu_custom_call.1} parent=23 // pred_check_branch
          %228 = sbr.rel (%p226) target = $region28
        $region27: #{tpu_custom_call.1} parent=23 // pred_region
          %s229 = sand.u32 %s46, 1
          %s230 = scalar_lea.sflag [#allocation4], %s229
          %s231 = sand.u32 %s46, 1
          %s232 = smul.addr %s231, 8
          %s233 = scalar_lea.vmem [#allocation3], %s232
          %235 = vsyncadd %s230, 0
          %s236 = sadd.s32 %s30, %s29
          %s237 = smul.addr %s236, 8
          %s238 = scalar_lea.hbm %s0, %s237
          %s240 = sshll.u32 %s238, 4
          %s241 = int_to_ptr.hbm [resolvable:$true] %s240
          %s242 = sshll.u32 %s233, 4
          %s243 = int_to_ptr.vmem [resolvable:$true] %s242
          %245 = dma.hbm_to_vmem [thread:$0]  %s241, 128, %s243, %s230
        $region28: #{tpu_custom_call.1} parent=23 // pred_fallthru
          _
      $region24: #{tpu_custom_call.1} parent=5 // pred_fallthru
        _
      %p246 = scmp.le.s32.totalorder 1, %s22
      %p247 = scmp.lt.s32.totalorder %s22, 3
      %p248 = pnand %p246, %p247
      %p249 = pneg %p248
      // Predicated region
      $region29: #{tpu_custom_call.1} parent=5 // pred_check
        _
      $region30: #{tpu_custom_call.1} parent=5 // pred_check_branch
        %251 = sbr.rel (%p248) target = $region32
      $region31: #{tpu_custom_call.1} parent=5 // pred_region
        %s252 = ssub.s32 %s22, 1
        %s253 = sand.u32 %s49, 1
        %s254 = scalar_lea.sflag [#allocation4], %s253
        %s255 = sand.u32 %s49, 1
        %s256 = smul.addr %s255, 8
        %s257 = scalar_lea.vmem [#allocation3], %s256
        // Predicated region
        $region33: #{tpu_custom_call.1} parent=31 // pred_check
          %p258 = pneg %p62
        $region34: #{tpu_custom_call.1} parent=31 // pred_check_branch
          %260 = sbr.rel (%p258) target = $region36
        $region35: #{tpu_custom_call.1} parent=31 // pred_region
          %262 = dma.done %s254, 128
        $region36: #{tpu_custom_call.1} parent=31 // pred_fallthru
          _
        // Predicated region
        $region37: #{tpu_custom_call.1} parent=31 // pred_check
          %p263 = pneg %p88
        $region38: #{tpu_custom_call.1} parent=31 // pred_check_branch
          %265 = sbr.rel (%p263) target = $region40
        $region39: #{tpu_custom_call.1} parent=31 // pred_region
          %267 = dma.done [#allocation7], 512
        $region40: #{tpu_custom_call.1} parent=31 // pred_fallthru
          _
        %s268 = sand.u32 %s49, 1
        %s269 = scalar_lea.sflag [#allocation4], %s268
        %s270 = sand.u32 %s49, 1
        %s271 = smul.addr %s270, 8
        %s272 = scalar_lea.vmem [#allocation3], %s271
        %p273 = pneg %p62
        %p274 = pneg %p59
        %p275 = pneg %p88
        %p276 = pneg %p85
        %p277 = pneg %p109
        %p278 = pneg %p106
        %p279 = pneg %p135
        %p280 = pneg %p132
        %s281 = sand.u32 %s122, 1
        %s282 = scalar_lea.sflag [#allocation5], %s281
        %s283 = sand.u32 %s122, 1
        %s284 = smul.addr %s283, 8
        %s285 = scalar_lea.vmem [#allocation8], %s284
        %p286 = pneg %p161
        %p287 = pneg %p158
        %s288 = sand.u32 %s27, 1
        %s289 = scalar_lea.sflag [#allocation10], %s288
        %s290 = sand.u32 %s148, 1
        %s291 = smul.addr %s290, 8
        %s292 = scalar_lea.vmem [#allocation9], %s291
        %p293 = pneg %p187
        %p294 = pneg %p184
        %s295 = sand.u32 %s27, 1
        %s296 = scalar_lea.sflag [#allocation10], %s295
        %s297 = sand.u32 %s174, 1
        %s298 = smul.addr %s297, 8
        %s299 = scalar_lea.vmem [#allocation11], %s298
        %s300 = smul.u32 4, %s32
        %p301 = scmp.eq.s32.totalorder %s32, 0
        // Predicated region
        $region41: #{tpu_custom_call.1} parent=31 // pred_check
          %p302 = pneg %p301
        $region42: #{tpu_custom_call.1} parent=31 // pred_check_branch
          %304 = sbr.rel (%p302) target = $region44
        $region43: #{tpu_custom_call.1} parent=31 // pred_region
          %vm305 = vcmask 785408
          %306 = vst.msk [vmem:[#allocation2] sm:$0xff] %vm305, 0.0
        $region44: #{tpu_custom_call.1} parent=31 // pred_fallthru
          _
        %v307 = vld [vmem:[%s257] sm:$0xff]
        %v308 = vld [vmem:[#allocation6] sm:$0xff]
        %v309 = vld [vmem:[#allocation6 + $0x8] sm:$0xff]
        %v310 = vld [vmem:[#allocation6 + $0x10] sm:$0xff]
        %v311 = vld [vmem:[#allocation6 + $0x18] sm:$0xff]
        %v312 = vld [vmem:[#allocation2] sm:$0xff]
        %vm313 = vcmask 261120
        %v315 = vsel %vm313, %v307, 0
        %317 = vmatpush.msra.mxu0 0.0
        %318 = vmatpush.msra.mxu0 0.0
        %319 = vmatpush.msra.mxu0 0.0
        %320 = vmatpush.msra.mxu0 0.0
        %321 = vmatpush.msra.mxu0 0.0
        %322 = vmatpush.msra.mxu0 0.0
        %323 = vmatpush.msra.mxu0 0.0
        %324 = vmatpush.msra.mxu0 0.0
        %325 = vmatpush.msra.mxu0 0.0
        %326 = vmatpush.msra.mxu0 0.0
        %327 = vmatpush.msra.mxu0 0.0
        %328 = vmatpush.msra.mxu0 0.0
        %329 = vmatpush.msra.mxu0 %v311
        %330 = vmatpush.msra.mxu0 %v310
        %331 = vmatpush.msra.mxu0 %v309
        %332 = vmatpush.msra.mxu0 %v308
        %333 = vmatmul.f32.gmra.mxu0 %v315
        %v334 = vpop.f32.mrf.mxu0
        %v335 = vadd.f32 0.0, %v334
        %336 = vdwg.mxu0
        %v337 = vadd.f32 %v312, %v335
        %vm338 = vcmask 785408
        %339 = vst.msk [vmem:[#allocation2] sm:$0xff] %vm338, %v337
        // Predicated region
        $region45: #{tpu_custom_call.1} parent=31 // pred_check
          %p340 = pneg %p301
        $region46: #{tpu_custom_call.1} parent=31 // pred_check_branch
          %342 = sbr.rel (%p340) target = $region48
        $region47: #{tpu_custom_call.1} parent=31 // pred_region
          %v343 = vld [vmem:[#allocation2] sm:$0xff]
          %v344 = vld [vmem:[%s2] sm:$0x1]
          %v346 = vperm.slane %v344, 0
          %v348 = vadd.f32 %v343, %v346
          %349 = vst.msk [vmem:[%s285] sm:$0xff] %vm313, %v348
          %351 = vrot.lane.b32.xlu0 %v348, 96
          %v352 = vpop.permute.xlu0 %351
          %354 = vst.msk [vmem:[%s292] sm:$0xff] %vm313, %v352
          %355 = vrot.lane.b32.xlu0 %v348, 64
          %v356 = vpop.permute.xlu0 %355
          %358 = vst.msk [vmem:[%s299] sm:$0xff] %vm313, %v356
        $region48: #{tpu_custom_call.1} parent=31 // pred_fallthru
          _
        %s359 = sand.u32 %s122, 1
        %s360 = scalar_lea.sflag [#allocation5], %s359
        %s361 = sand.u32 %s122, 1
        %s362 = smul.addr %s361, 8
        %s363 = scalar_lea.vmem [#allocation8], %s362
        %s364 = sand.u32 %s27, 1
        %s365 = scalar_lea.sflag [#allocation10], %s364
        %s366 = sand.u32 %s148, 1
        %s367 = smul.addr %s366, 8
        %s368 = scalar_lea.vmem [#allocation9], %s367
        %s369 = sand.u32 %s27, 1
        %s370 = scalar_lea.sflag [#allocation10], %s369
        %s371 = sand.u32 %s174, 1
        %s372 = smul.addr %s371, 8
        %s373 = scalar_lea.vmem [#allocation11], %s372
        // Predicated region
        $region49: #{tpu_custom_call.1} parent=31 // pred_check
          %p374 = pneg %p132
        $region50: #{tpu_custom_call.1} parent=31 // pred_check_branch
          %376 = sbr.rel (%p374) target = $region52
        $region51: #{tpu_custom_call.1} parent=31 // pred_region
          %378 = vsyncadd %s360, 0
          %s379 = smul.addr %s31, 8
          %s380 = scalar_lea.hbm %s3, %s379
          %s382 = sshll.u32 %s363, 4
          %s383 = int_to_ptr.vmem [resolvable:$true] %s382
          %s384 = sshll.u32 %s380, 4
          %s385 = int_to_ptr.hbm [resolvable:$true] %s384
          %387 = dma.vmem_to_hbm [thread:$0]  %s383, 128, %s385, %s360
        $region52: #{tpu_custom_call.1} parent=31 // pred_fallthru
          _
        // Predicated region
        $region53: #{tpu_custom_call.1} parent=31 // pred_check
          %p388 = pneg %p158
        $region54: #{tpu_custom_call.1} parent=31 // pred_check_branch
          %390 = sbr.rel (%p388) target = $region56
        $region55: #{tpu_custom_call.1} parent=31 // pred_region
          %392 = vsyncadd %s365, 0
          %s393 = smul.addr %s31, 8
          %s394 = scalar_lea.hbm %s4, %s393
          %s396 = sshll.u32 %s368, 4
          %s397 = int_to_ptr.vmem [resolvable:$true] %s396
          %s398 = sshll.u32 %s394, 4
          %s399 = int_to_ptr.hbm [resolvable:$true] %s398
          %401 = dma.vmem_to_hbm [thread:$0]  %s397, 128, %s399, %s365
        $region56: #{tpu_custom_call.1} parent=31 // pred_fallthru
          _
        // Predicated region
        $region57: #{tpu_custom_call.1} parent=31 // pred_check
          %p402 = pneg %p184
        $region58: #{tpu_custom_call.1} parent=31 // pred_check_branch
          %404 = sbr.rel (%p402) target = $region60
        $region59: #{tpu_custom_call.1} parent=31 // pred_region
          %406 = vsyncadd %s370, 0
          %s407 = smul.addr %s31, 8
          %s408 = scalar_lea.hbm %s5, %s407
          %s410 = sshll.u32 %s373, 4
          %s411 = int_to_ptr.vmem [resolvable:$true] %s410
          %s412 = sshll.u32 %s408, 4
          %s413 = int_to_ptr.hbm [resolvable:$true] %s412
          %415 = dma.vmem_to_hbm [thread:$0]  %s411, 128, %s413, %s370
        $region60: #{tpu_custom_call.1} parent=31 // pred_fallthru
          _
      $region32: #{tpu_custom_call.1} parent=5 // pred_fallthru
        _
      %p416 = scmp.le.s32.totalorder 2, %s22
      // Predicated region
      $region61: #{tpu_custom_call.1} parent=5 // pred_check
        %p417 = pneg %p416
      $region62: #{tpu_custom_call.1} parent=5 // pred_check_branch
        %419 = sbr.rel (%p417) target = $region64
      $region63: #{tpu_custom_call.1} parent=5 // pred_region
        %s420 = ssub.s32 %s22, 2
        // Predicated region
        $region65: #{tpu_custom_call.1} parent=63 // pred_check
          %p421 = pneg %p138
        $region66: #{tpu_custom_call.1} parent=63 // pred_check_branch
          %423 = sbr.rel (%p421) target = $region68
        $region67: #{tpu_custom_call.1} parent=63 // pred_region
          %s424 = sand.u32 %s123, 1
          %s425 = scalar_lea.sflag [#allocation5], %s424
          %s426 = sand.u32 %s123, 1
          %s427 = smul.addr %s426, 8
          %s428 = scalar_lea.vmem [#allocation8], %s427
          %430 = dma.done %s425, 128
        $region68: #{tpu_custom_call.1} parent=63 // pred_fallthru
          _
        // Predicated region
        $region69: #{tpu_custom_call.1} parent=63 // pred_check
          %p431 = pneg %p164
        $region70: #{tpu_custom_call.1} parent=63 // pred_check_branch
          %433 = sbr.rel (%p431) target = $region72
        $region71: #{tpu_custom_call.1} parent=63 // pred_region
          %s434 = sand.u32 %s28, 1
          %s435 = scalar_lea.sflag [#allocation10], %s434
          %s436 = sand.u32 %s149, 1
          %s437 = smul.addr %s436, 8
          %s438 = scalar_lea.vmem [#allocation9], %s437
          %440 = dma.done %s435, 128
        $region72: #{tpu_custom_call.1} parent=63 // pred_fallthru
          _
        // Predicated region
        $region73: #{tpu_custom_call.1} parent=63 // pred_check
          %p441 = pneg %p190
        $region74: #{tpu_custom_call.1} parent=63 // pred_check_branch
          %443 = sbr.rel (%p441) target = $region76
        $region75: #{tpu_custom_call.1} parent=63 // pred_region
          %s444 = sand.u32 %s28, 1
          %s445 = scalar_lea.sflag [#allocation10], %s444
          %s446 = sand.u32 %s175, 1
          %s447 = smul.addr %s446, 8
          %s448 = scalar_lea.vmem [#allocation11], %s447
          %450 = dma.done %s445, 128
        $region76: #{tpu_custom_call.1} parent=63 // pred_fallthru
          _
      $region64: #{tpu_custom_call.1} parent=5 // pred_fallthru
        _
    $region6: #{tpu_custom_call.1} parent=1 // loop_footer
      %s26 = sadd.s32 1, %s22
    $region7: #{tpu_custom_call.1} parent=1 // loop_footer_branch
      %21 = sbr.rel target = $region3
    $region8: #{tpu_custom_call.1} parent=1 // loop_exit
      _
    %451 = vsyncpa [#allocation4], 1
    %s452 = scalar_lea.sflag [#allocation4], 1
    %453 = vsyncpa %s452, 1
    %454 = vsyncpa [#allocation7], 1
    %455 = vsyncpa [#allocation5], 1
    %s456 = scalar_lea.sflag [#allocation5], 1
    %457 = vsyncpa %s456, 1
    %458 = vsyncpa [#allocation10], 1
    %s459 = scalar_lea.sflag [#allocation10], 1
    %460 = vsyncpa %s459, 1

</llo_original>
